<compile_context>
chip_gen: v6e
topology: v6e:2x2x1
jax: 0.10.0
libtpu: 0.0.40
codegen_flags: <defaults>
</compile_context>

<pallas_src>
import jax
import jax.numpy as jnp
from jax.experimental import pallas as pl
from jax.experimental.pallas import tpu as pltpu


def _channel_attention_kernel(x_ref, w1t_ref, w2_ref, o_ref, acc_ref):
    # x_ref   : (1, C, Ts)  VMEM -- one batch element, one lane-dense spatial tile
    # w1t_ref : (C, Ch)     VMEM -- fc1 weight transposed (Ch = C // 16)
    # w2_ref  : (C, Ch)     VMEM -- fc2 weight (out=C, in=Ch)
    # o_ref   : (1, C, 1)   VMEM -- sigmoid(fc2(relu(fc1(maxpool(x)))))
    # acc_ref : (C, Ts)     VMEM scratch -- running elementwise max across spatial tiles
    s = pl.program_id(1)

    @pl.when(s == 0)
    def _init():
        acc_ref[...] = jnp.full(acc_ref.shape, -jnp.inf, acc_ref.dtype)

    # Running max stays elementwise (pure VPU, full-width vregs); the lane
    # reduction happens exactly once, at the final spatial tile.
    acc_ref[...] = jnp.maximum(acc_ref[...], x_ref[0].astype(acc_ref.dtype))

    @pl.when(s == pl.num_programs(1) - 1)
    def _finalize():
        m = jnp.max(acc_ref[...], axis=-1, keepdims=True)            # (C, 1)
        # fc1 + relu:  h[j] = sum_c w1[j, c] * m[c]   ->  (1, Ch)
        h = jnp.maximum(jnp.sum(w1t_ref[...] * m, axis=0, keepdims=True), 0.0)
        # fc2:         y[c] = sum_j w2[c, j] * h[j]   ->  (C, 1)
        y = jnp.sum(w2_ref[...] * h, axis=1, keepdims=True)
        o_ref[0] = jax.nn.sigmoid(y).astype(o_ref.dtype)


def _choose_spatial_tile(hw, c, max_block_bytes=4 << 20):
    """Largest spatial tile (divisor of hw, multiple of 128 lanes) whose f32
    block 4*c*ts stays under max_block_bytes; small inputs use the full HW."""
    budget = max(128, max_block_bytes // (4 * c))
    if hw <= budget:
        return hw
    for ts in range(min(hw, budget), 127, -1):
        if hw % ts == 0 and ts % 128 == 0:
            return ts
    return hw  # TODO(synk): pad HW in the wrapper for awkward spatial sizes


def channel_attention(x, w1, w2, *, max_block_bytes=4 << 20):
    """x: (B, C, H, W) f32; w1: (C//16, C) f32; w2: (C, C//16) f32
    -> (B, C, 1, 1) f32 (matches ChannelAttention.forward)."""
    B, C, H, W = x.shape
    Ch = w1.shape[0]
    assert w1.shape == (Ch, C) and w2.shape == (C, Ch), (w1.shape, w2.shape)

    HW = H * W
    Ts = _choose_spatial_tile(HW, C, max_block_bytes)
    S = HW // Ts

    x3 = x.reshape(B, C, HW)     # lane-dense last axis for the streamed max
    w1t = w1.T                   # (C, Ch) so fc1 needs no in-kernel transpose

    cost = pl.CostEstimate(
        flops=B * C * HW + 4 * B * C * Ch,       # max compares + two tiny matmuls
        transcendentals=B * C,                   # sigmoid
        bytes_accessed=4 * (B * C * HW + 2 * C * Ch + B * C),
    )

    out = pl.pallas_call(
        _channel_attention_kernel,
        out_shape=jax.ShapeDtypeStruct((B, C, 1), x.dtype),
        grid=(B, S),
        in_specs=[
            pl.BlockSpec((1, C, Ts), lambda b, s: (b, 0, s)),
            pl.BlockSpec((C, Ch), lambda b, s: (0, 0)),
            pl.BlockSpec((C, Ch), lambda b, s: (0, 0)),
        ],
        out_specs=pl.BlockSpec((1, C, 1), lambda b, s: (b, 0, 0)),
        scratch_shapes=[pltpu.VMEM((C, Ts), jnp.float32)],
        compiler_params=pltpu.CompilerParams(
            dimension_semantics=("parallel", "arbitrary")),
        cost_estimate=cost,
    )(x3, w1t, w2)

    return out.reshape(B, C, 1, 1)


def _reference(x, w1, w2):
    # Pure-JAX reference matching the torch module exactly.
    m = jnp.max(x, axis=(2, 3))                          # AdaptiveMaxPool2d(1)
    h = jnp.maximum(m @ w1.T, 0.0)                       # fc1 (1x1 conv) + relu
    y = h @ w2.T                                         # fc2 (1x1 conv)
    return jax.nn.sigmoid(y)[:, :, None, None]           # (B, C, 1, 1)


if __name__ == "__main__":
    key = jax.random.PRNGKey(0)
    kx, k1, k2 = jax.random.split(key, 3)

    # C must be a multiple of 16: fc1 maps C -> C // 16 channels.
    B, C, H, W = 2, 32, 16, 16
    Ch = C // 16

    x = jax.random.normal(kx, (B, C, H, W), dtype=jnp.float32)

    # Deterministic synthetic 1x1-conv weights, PyTorch-default-like scale
    # (kaiming-uniform bound = 1/sqrt(fan_in), fan_in = in_channels * 1 * 1).
    b1 = 1.0 / (C ** 0.5)
    w1 = jax.random.uniform(k1, (Ch, C), jnp.float32, -b1, b1)   # fc1: (out=C//16, in=C)
    b2 = 1.0 / (Ch ** 0.5)
    w2 = jax.random.uniform(k2, (C, Ch), jnp.float32, -b2, b2)   # fc2: (out=C, in=C//16)

    out = jax.block_until_ready(channel_attention(x, w1, w2))
    ref = _reference(x, w1, w2)

    assert out.shape == (B, C, 1, 1), out.shape
    assert jnp.allclose(out, ref, atol=1e-5, rtol=1e-5), \
        f"max abs err = {jnp.max(jnp.abs(out - ref))}"

    print("KERNEL_OK")
</pallas_src>

<mosaic_0001>
module attributes {stable_mosaic.version = 11 : i64} {
  func.func @_channel_attention_kernel(%arg0: i32, %arg1: i32, %arg2: memref<1x32x256xf32, #tpu.memory_space<vmem>>, %arg3: memref<32x2xf32, #tpu.memory_space<vmem>>, %arg4: memref<32x2xf32, #tpu.memory_space<vmem>>, %arg5: memref<1x32x1xf32, #tpu.memory_space<vmem>>, %arg6: memref<32x256xf32, #tpu.memory_space<vmem>>) attributes {dimension_semantics = [#tpu.dimension_semantics<parallel>, #tpu.dimension_semantics<arbitrary>], iteration_bounds = array<i64: 2, 1>, scalar_prefetch = 0 : i64, scratch_operands = 1 : i64, tpu.core_type = #tpu.core_type<tc>, window_params = [{transform_indices = @transform_0, window_bounds = array<i64: 1, 32, 256>}, {pipeline_mode = #tpu.pipeline_mode<synchronous>, transform_indices = @transform_1, window_bounds = array<i64: 32, 2>}, {pipeline_mode = #tpu.pipeline_mode<synchronous>, transform_indices = @transform_2, window_bounds = array<i64: 32, 2>}, {transform_indices = @transform_3, window_bounds = array<i64: 1, 32, 1>}]} {
    %c0_i32 = arith.constant 0 : i32
    %0 = arith.cmpi eq, %arg1, %c0_i32 : i32
    %1 = arith.extui %0 : i1 to i32
    %c0_i32_0 = arith.constant 0 : i32
    %2 = arith.cmpi ne, %1, %c0_i32_0 : i32
    scf.if %2 {
      %cst = arith.constant 0xFF800000 : f32
      %11 = vector.broadcast %cst : f32 to vector<32x256xf32>
      %c0_9 = arith.constant 0 : index
      %c0_10 = arith.constant 0 : index
      %12 = vector.load %arg6[%c0_9, %c0_10] : memref<32x256xf32, #tpu.memory_space<vmem>>, vector<32x256xf32>
      tpu.vector_store %arg6[%c0_9, %c0_10], %11 {strides = array<i32>} : memref<32x256xf32, #tpu.memory_space<vmem>>, vector<32x256xf32>,
    } else {
    }
    %c0 = arith.constant 0 : index
    %c0_1 = arith.constant 0 : index
    %3 = vector.load %arg6[%c0, %c0_1] : memref<32x256xf32, #tpu.memory_space<vmem>>, vector<32x256xf32>
    %c0_2 = arith.constant 0 : index
    %c0_3 = arith.constant 0 : index
    %c0_4 = arith.constant 0 : index
    %4 = vector.load %arg2[%c0_2, %c0_3, %c0_4] : memref<1x32x256xf32, #tpu.memory_space<vmem>>, vector<1x32x256xf32>
    %5 = vector.shape_cast %4 : vector<1x32x256xf32> to vector<32x256xf32>
    %6 = arith.maximumf %3, %5 : vector<32x256xf32>
    %c0_5 = arith.constant 0 : index
    %c0_6 = arith.constant 0 : index
    %7 = vector.load %arg6[%c0_5, %c0_6] : memref<32x256xf32, #tpu.memory_space<vmem>>, vector<32x256xf32>
    tpu.vector_store %arg6[%c0_5, %c0_6], %6 {strides = array<i32>} : memref<32x256xf32, #tpu.memory_space<vmem>>, vector<32x256xf32>,
    %c0_i32_7 = arith.constant 0 : i32
    %8 = arith.cmpi eq, %arg1, %c0_i32_7 : i32
    %9 = arith.extui %8 : i1 to i32
    %c0_i32_8 = arith.constant 0 : i32
    %10 = arith.cmpi ne, %9, %c0_i32_8 : i32
    scf.if %10 {
      %c0_9 = arith.constant 0 : index
      %c0_10 = arith.constant 0 : index
      %11 = vector.load %arg6[%c0_9, %c0_10] : memref<32x256xf32, #tpu.memory_space<vmem>>, vector<32x256xf32>
      %cst = arith.constant dense<0xFF800000> : vector<32xf32>
      %12 = vector.multi_reduction <maximumf>, %11, %cst [1] : vector<32x256xf32> to vector<32xf32>
      %13 = vector.shape_cast %12 : vector<32xf32> to vector<32x1xf32>
      %c0_11 = arith.constant 0 : index
      %c0_12 = arith.constant 0 : index
      %14 = vector.load %arg3[%c0_11, %c0_12] : memref<32x2xf32, #tpu.memory_space<vmem>>, vector<32x2xf32>
      %15 = vector.broadcast %13 : vector<32x1xf32> to vector<32x2xf32>
      %16 = arith.mulf %14, %15 : vector<32x2xf32>
      %cst_13 = arith.constant dense<0.000000e+00> : vector<2xf32>
      %17 = vector.multi_reduction <add>, %16, %cst_13 [0] : vector<32x2xf32> to vector<2xf32>
      %18 = vector.shape_cast %17 : vector<2xf32> to vector<1x2xf32>
      %cst_14 = arith.constant 0.000000e+00 : f32
      %19 = vector.broadcast %cst_14 : f32 to vector<1x2xf32>
      %20 = arith.maximumf %18, %19 : vector<1x2xf32>
      %c0_15 = arith.constant 0 : index
      %c0_16 = arith.constant 0 : index
      %21 = vector.load %arg4[%c0_15, %c0_16] : memref<32x2xf32, #tpu.memory_space<vmem>>, vector<32x2xf32>
      %22 = vector.broadcast %20 : vector<1x2xf32> to vector<32x2xf32>
      %23 = arith.mulf %21, %22 : vector<32x2xf32>
      %cst_17 = arith.constant dense<0.000000e+00> : vector<32xf32>
      %24 = vector.multi_reduction <add>, %23, %cst_17 [1] : vector<32x2xf32> to vector<32xf32>
      %25 = vector.shape_cast %24 : vector<32xf32> to vector<32x1xf32>
      %26 = arith.negf %25 : vector<32x1xf32>
      %27 = math.exp %26 : vector<32x1xf32>
      %cst_18 = arith.constant 1.000000e+00 : f32
      %28 = vector.broadcast %cst_18 : f32 to vector<32x1xf32>
      %29 = arith.addf %28, %27 : vector<32x1xf32>
      %30 = arith.divf %28, %29 : vector<32x1xf32>
      %c0_19 = arith.constant 0 : index
      %c0_20 = arith.constant 0 : index
      %c0_21 = arith.constant 0 : index
      %31 = vector.load %arg5[%c0_19, %c0_20, %c0_21] : memref<1x32x1xf32, #tpu.memory_space<vmem>>, vector<1x32x1xf32>
      %32 = vector.shape_cast %31 : vector<1x32x1xf32> to vector<32x1xf32>
      %33 = vector.shape_cast %30 : vector<32x1xf32> to vector<1x32x1xf32>
      tpu.vector_store %arg5[%c0_19, %c0_20, %c0_21], %33 {strides = array<i32>} : memref<1x32x1xf32, #tpu.memory_space<vmem>>, vector<1x32x1xf32>,
    } else {
    }
    return
  }
  func.func @transform_0(%arg0: i32, %arg1: i32) -> (i32, i32, i32) {
    %c0_i32 = arith.constant 0 : i32
    %c0_i32_0 = arith.constant 0 : i32
    return %arg0, %c0_i32, %arg1 : i32, i32, i32
  }
  func.func @transform_1(%arg0: i32, %arg1: i32) -> (i32, i32) {
    %c0_i32 = arith.constant 0 : i32
    %c0_i32_0 = arith.constant 0 : i32
    %c0_i32_1 = arith.constant 0 : i32
    return %c0_i32, %c0_i32_0 : i32, i32
  }
  func.func @transform_2(%arg0: i32, %arg1: i32) -> (i32, i32) {
    %c0_i32 = arith.constant 0 : i32
    %c0_i32_0 = arith.constant 0 : i32
    %c0_i32_1 = arith.constant 0 : i32
    return %c0_i32, %c0_i32_0 : i32, i32
  }
  func.func @transform_3(%arg0: i32, %arg1: i32) -> (i32, i32, i32) {
    %c0_i32 = arith.constant 0 : i32
    %c0_i32_0 = arith.constant 0 : i32
    %c0_i32_1 = arith.constant 0 : i32
    return %arg0, %c0_i32, %c0_i32_0 : i32, i32, i32
  }
}

</mosaic_0001>

<llo_original>
// kernel: tpu_custom_call.1
$region0: #{tpu_custom_call.1}
  #allocation0 [shape = 'u32[]', space=smem, size = 0x4, offset = 0x4, fixed_abs, tag = 'smem constant byte address 0x4 - core index']
  #allocation1 [shape = 'u32[144,128]{1,0:T(1,128)}', space=vmem, size = 0x12000, scoped, tag = 'internal scratch']
  #allocation2 [shape = 'f32[32,256]{1,0:T(8,128)}', space=vmem, size = 0x8000, scoped, tag = 'scratch operand']
  %s0 = inlined_call_operand.hbm [shape: f32[2,32,256], index: 0, kind: input, shape index: {}]
  %s1 = inlined_call_operand.vmem [shape: f32[32,2], index: 1, kind: input, shape index: {}]
  %s2 = inlined_call_operand.vmem [shape: f32[32,2], index: 2, kind: input, shape index: {}]
  %s3 = inlined_call_operand.vmem [shape: f32[2,32,1], index: 3, kind: output, shape index: {}]
  %s4 = sld [smem:[#allocation0]]
  $region57: #{tpu_custom_call.1} parent=0
    _
  %s6 = ssub.s32 1, %s4
  %s7 = scalar_select 0, %s6, %s4
  $region1: #{tpu_custom_call.1} parent=0
    #allocation3 [shape = 'u8[65536]{0}', space=vmem, size = 0x10000, scoped, tag = 'input window, operand 0']
    #allocation4 [shape = 's32[2]{0}', space=sflag, size = 0x8, scoped, tag = 'scoped memory for tpu_custom_call.1']
    %8 = vsyncpa [#allocation4], 0
    %s9 = scalar_lea.sflag [#allocation4], 1
    %10 = vsyncpa %s9, 0
    loop: start=0, step=1, limit=4
    $region2: #{tpu_custom_call.1} parent=1 // loop_pre_header
      _
    $region3: #{tpu_custom_call.1} parent=1 // loop_header
      %s12 = sphi 0, %s16
      %p13 = scmp.ge.s32.totalorder %s12, 4
      %s19 = sphi 0, %s31
      %s20 = sphi 0, %s27
      %s21 = sphi 0, %s19
      %s22 = sphi 0, %s20
      %s23 = sphi 0, %s21
      %s24 = sphi 0, %s22
      %s36 = sphi 0, %s38
      %s39 = sphi 0, %s36
      %s40 = sphi 0, %s39
      %s56 = sphi 0, %s40
      %s60 = sphi 0, %s60
      %s62 = sphi 0, %s60
      %s63 = sphi 0, %s62
      %s77 = sphi 0, %s63
      %s81 = sphi 0, %s81
      %s83 = sphi 0, %s81
      %s84 = sphi 0, %s83
      %s98 = sphi 0, %s84
      %s104 = sphi 0, %s106
      %s107 = sphi 0, %s104
      %s108 = sphi 0, %s107
      %s124 = sphi 0, %s108
    $region4: #{tpu_custom_call.1} parent=1 // loop_header_branch
      %15 = sbr.rel (%p13) target = $region8
    $region5: #{tpu_custom_call.1} parent=1 // loop_body
      %s17 = ssub.s32 %s12, 1
      %s18 = ssub.s32 %s12, 2
      %s25 = sadd.s32 1, %s20
      %p26 = scmp.ge.s32.totalorder %s25, 1
      %s27 = scalar_select %p26, 0, %s25
      %s28 = sadd.s32 1, %s19
      %s29 = scalar_select %p26, %s28, %s19
      %p30 = scmp.ge.s32.totalorder %s29, 2
      %s31 = scalar_select %p30, 0, %s29
      %s32 = ssub.s32 %s19, %s31
      %s33 = ssub.s32 %s20, %s27
      %s34 = sor.u32 %s32, %s33
      %p35 = scmp.eq.s32.totalorder %s34, 0
      %s37 = sadd.s32 %s36, 1
      %s38 = scalar_select %p35, %s36, %s37
      %p41 = pneg %p35
      %p42 = scmp.eq.s32.totalorder %s12, 1
      %p43 = por %p41, %p42
      %p44 = scmp.ne.s32.totalorder %s36, %s39
      %p45 = scmp.eq.s32.totalorder %s12, 0
      %p46 = por %p44, %p45
      %p47 = scmp.ne.s32.totalorder %s36, %s39
      %p48 = scmp.eq.s32.totalorder %s17, 1
      %p49 = por %p47, %p48
      %p50 = scmp.ne.s32.totalorder %s39, %s40
      %p51 = scmp.eq.s32.totalorder %s17, 0
      %p52 = por %p50, %p51
      %p53 = scmp.ne.s32.totalorder %s39, %s40
      %p54 = scmp.eq.s32.totalorder %s18, 1
      %p55 = por %p53, %p54
      %p57 = scmp.ne.s32.totalorder %s40, %s56
      %p58 = scmp.eq.s32.totalorder %s18, 0
      %p59 = por %p57, %p58
      %s61 = sadd.s32 %s60, 1
      %p64 = scmp.eq.s32.totalorder %s12, 1
      %p65 = scmp.ne.s32.totalorder %s60, %s62
      %p66 = scmp.eq.s32.totalorder %s12, 0
      %p67 = por %p65, %p66
      %p68 = scmp.ne.s32.totalorder %s60, %s62
      %p69 = scmp.eq.s32.totalorder %s17, 1
      %p70 = por %p68, %p69
      %p71 = scmp.ne.s32.totalorder %s62, %s63
      %p72 = scmp.eq.s32.totalorder %s17, 0
      %p73 = por %p71, %p72
      %p74 = scmp.ne.s32.totalorder %s62, %s63
      %p75 = scmp.eq.s32.totalorder %s18, 1
      %p76 = por %p74, %p75
      %p78 = scmp.ne.s32.totalorder %s63, %s77
      %p79 = scmp.eq.s32.totalorder %s18, 0
      %p80 = por %p78, %p79
      %s82 = sadd.s32 %s81, 1
      %p85 = scmp.eq.s32.totalorder %s12, 1
      %p86 = scmp.ne.s32.totalorder %s81, %s83
      %p87 = scmp.eq.s32.totalorder %s12, 0
      %p88 = por %p86, %p87
      %p89 = scmp.ne.s32.totalorder %s81, %s83
      %p90 = scmp.eq.s32.totalorder %s17, 1
      %p91 = por %p89, %p90
      %p92 = scmp.ne.s32.totalorder %s83, %s84
      %p93 = scmp.eq.s32.totalorder %s17, 0
      %p94 = por %p92, %p93
      %p95 = scmp.ne.s32.totalorder %s83, %s84
      %p96 = scmp.eq.s32.totalorder %s18, 1
      %p97 = por %p95, %p96
      %p99 = scmp.ne.s32.totalorder %s84, %s98
      %p100 = scmp.eq.s32.totalorder %s18, 0
      %p101 = por %p99, %p100
      %s102 = ssub.s32 %s19, %s31
      %p103 = scmp.eq.s32.totalorder %s102, 0
      %s105 = sadd.s32 %s104, 1
      %s106 = scalar_select %p103, %s104, %s105
      %p109 = pneg %p103
      %p110 = scmp.eq.s32.totalorder %s12, 1
      %p111 = por %p109, %p110
      %p112 = scmp.ne.s32.totalorder %s104, %s107
      %p113 = scmp.eq.s32.totalorder %s12, 0
      %p114 = por %p112, %p113
      %p115 = scmp.ne.s32.totalorder %s104, %s107
      %p116 = scmp.eq.s32.totalorder %s17, 1
      %p117 = por %p115, %p116
      %p118 = scmp.ne.s32.totalorder %s107, %s108
      %p119 = scmp.eq.s32.totalorder %s17, 0
      %p120 = por %p118, %p119
      %p121 = scmp.ne.s32.totalorder %s107, %s108
      %p122 = scmp.eq.s32.totalorder %s18, 1
      %p123 = por %p121, %p122
      %p125 = scmp.ne.s32.totalorder %s108, %s124
      %p126 = scmp.eq.s32.totalorder %s18, 0
      %p127 = por %p125, %p126
      %p128 = scmp.le.s32.totalorder 1, %s12
      %p129 = scmp.lt.s32.totalorder %s12, 3
      %p130 = pnand %p128, %p129
      %p131 = pneg %p130
      // Predicated region
      $region9: #{tpu_custom_call.1} parent=5 // pred_check
        _
      $region10: #{tpu_custom_call.1} parent=5 // pred_check_branch
        %133 = sbr.rel (%p130) target = $region12
      $region11: #{tpu_custom_call.1} parent=5 // pred_region
        %s134 = ssub.s32 %s12, 1
        // Predicated region
        $region13: #{tpu_custom_call.1} parent=11 // pred_check
          %p135 = pneg %p73
        $region14: #{tpu_custom_call.1} parent=11 // pred_check_branch
          %137 = sbr.rel (%p135) target = $region16
        $region15: #{tpu_custom_call.1} parent=11 // pred_region
          _
        $region16: #{tpu_custom_call.1} parent=11 // pred_fallthru
          _
        // Predicated region
        $region17: #{tpu_custom_call.1} parent=11 // pred_check
          %p138 = pneg %p94
        $region18: #{tpu_custom_call.1} parent=11 // pred_check_branch
          %140 = sbr.rel (%p138) target = $region20
        $region19: #{tpu_custom_call.1} parent=11 // pred_region
          _
        $region20: #{tpu_custom_call.1} parent=11 // pred_fallthru
          _
      $region12: #{tpu_custom_call.1} parent=5 // pred_fallthru
        _
      %p141 = scmp.lt.s32.totalorder %s12, 2
      // Predicated region
      $region21: #{tpu_custom_call.1} parent=5 // pred_check
        %p142 = pneg %p141
      $region22: #{tpu_custom_call.1} parent=5 // pred_check_branch
        %144 = sbr.rel (%p142) target = $region24
      $region23: #{tpu_custom_call.1} parent=5 // pred_region
        // Predicated region
        $region25: #{tpu_custom_call.1} parent=23 // pred_check
          %p145 = pneg %p46
        $region26: #{tpu_custom_call.1} parent=23 // pred_check_branch
          %147 = sbr.rel (%p145) target = $region28
        $region27: #{tpu_custom_call.1} parent=23 // pred_region
          %s148 = sand.u32 %s36, 1
          %s149 = scalar_lea.sflag [#allocation4], %s148
          %s150 = sand.u32 %s36, 1
          %s151 = smul.addr %s150, 64
          %s152 = scalar_lea.vmem [#allocation3], %s151
          %s153 = smul.u32 2, %s20
          %s155 = ssub.s32 1024, 1024
          %156 = vsyncadd %s149, %s155
          %s157 = smul.addr %s19, 8
          %s158 = sadd.s32 %s153, %s157
          %s159 = smul.addr %s158, 128
          %s160 = scalar_lea.hbm %s0, %s159
          %s161 = sshll.u32 %s152, 4
          %s162 = int_to_ptr.vmem [resolvable:$true] %s161
          %167 = dma.hbm_to_vmem [thread:$0]  %s160, 1024, %s162, %s149, 256, 256, 16
        $region28: #{tpu_custom_call.1} parent=23 // pred_fallthru
          _
      $region24: #{tpu_custom_call.1} parent=5 // pred_fallthru
        _
      %p168 = scmp.le.s32.totalorder 1, %s12
      %p169 = scmp.lt.s32.totalorder %s12, 3
      %p170 = pnand %p168, %p169
      %p171 = pneg %p170
      // Predicated region
      $region29: #{tpu_custom_call.1} parent=5 // pred_check
        _
      $region30: #{tpu_custom_call.1} parent=5 // pred_check_branch
        %173 = sbr.rel (%p170) target = $region32
      $region31: #{tpu_custom_call.1} parent=5 // pred_region
        %s174 = ssub.s32 %s12, 1
        %s175 = sand.u32 %s39, 1
        %s176 = scalar_lea.sflag [#allocation4], %s175
        %s177 = sand.u32 %s39, 1
        %s178 = smul.addr %s177, 64
        %s179 = scalar_lea.vmem [#allocation3], %s178
        // Predicated region
        $region33: #{tpu_custom_call.1} parent=31 // pred_check
          %p180 = pneg %p52
        $region34: #{tpu_custom_call.1} parent=31 // pred_check_branch
          %182 = sbr.rel (%p180) target = $region36
        $region35: #{tpu_custom_call.1} parent=31 // pred_region
          %183 = dma.done %s176, 1024
        $region36: #{tpu_custom_call.1} parent=31 // pred_fallthru
          _
        %s184 = sand.u32 %s39, 1
        %s185 = scalar_lea.sflag [#allocation4], %s184
        %s186 = sand.u32 %s39, 1
        %s187 = smul.addr %s186, 64
        %s188 = scalar_lea.vmem [#allocation3], %s187
        %p189 = pneg %p52
        %p190 = pneg %p49
        %p191 = pneg %p73
        %p192 = pneg %p70
        %p193 = pneg %p94
        %p194 = pneg %p91
        %p195 = pneg %p120
        %p196 = pneg %p117
        %p197 = scmp.lt.s32.totalorder %s21, 1
        %s198 = scalar_select %p197, %s21, 1
        %s199 = smul.addr %s198, 4
        %s200 = smul.addr %s199, 8
        %s201 = scalar_lea.vmem %s3, %s200
        %s202 = smul.u32 2, %s22
        %p203 = scmp.lt.s32.totalorder %s21, 1
        %s204 = scalar_select %p203, %s21, 1
        %s205 = smul.addr %s204, 4
        %s206 = smul.addr %s205, 8
        %s207 = scalar_lea.vmem %s3, %s206
        %p208 = scmp.eq.s32.totalorder %s22, 0
        // Predicated region
        $region37: #{tpu_custom_call.1} parent=31 // pred_check
          %p209 = pneg %p208
        $region38: #{tpu_custom_call.1} parent=31 // pred_check_branch
          %211 = sbr.rel (%p209) target = $region40
        $region39: #{tpu_custom_call.1} parent=31 // pred_region
          %212 = vst [vmem:[#allocation2] sm:$0xff] -inf
          %213 = vst [vmem:[#allocation2 + $0x8] sm:$0xff] -inf
          %214 = vst [vmem:[#allocation2 + $0x10] sm:$0xff] -inf
          %215 = vst [vmem:[#allocation2 + $0x18] sm:$0xff] -inf
          %216 = vst [vmem:[#allocation2 + $0x20] sm:$0xff] -inf
          %217 = vst [vmem:[#allocation2 + $0x28] sm:$0xff] -inf
          %218 = vst [vmem:[#allocation2 + $0x30] sm:$0xff] -inf
          %219 = vst [vmem:[#allocation2 + $0x38] sm:$0xff] -inf
        $region40: #{tpu_custom_call.1} parent=31 // pred_fallthru
          _
        %v220 = vld [vmem:[#allocation2] sm:$0xff]
        %v221 = vld [vmem:[#allocation2 + $0x8] sm:$0xff]
        %v222 = vld [vmem:[#allocation2 + $0x10] sm:$0xff]
        %v223 = vld [vmem:[#allocation2 + $0x18] sm:$0xff]
        %v224 = vld [vmem:[#allocation2 + $0x20] sm:$0xff]
        %v225 = vld [vmem:[#allocation2 + $0x28] sm:$0xff]
        %v226 = vld [vmem:[#allocation2 + $0x30] sm:$0xff]
        %v227 = vld [vmem:[#allocation2 + $0x38] sm:$0xff]
        %v228 = vld [vmem:[%s179] sm:$0xff]
        %v229 = vld [vmem:[%s179 + $0x8] sm:$0xff]
        %v230 = vld [vmem:[%s179 + $0x10] sm:$0xff]
        %v231 = vld [vmem:[%s179 + $0x18] sm:$0xff]
        %v232 = vld [vmem:[%s179 + $0x20] sm:$0xff]
        %v233 = vld [vmem:[%s179 + $0x28] sm:$0xff]
        %v234 = vld [vmem:[%s179 + $0x30] sm:$0xff]
        %v235 = vld [vmem:[%s179 + $0x38] sm:$0xff]
        %v236 = vmax.f32 %v220, %v228
        %v237 = vmax.f32 %v221, %v229
        %v238 = vmax.f32 %v222, %v230
        %v239 = vmax.f32 %v223, %v231
        %v240 = vmax.f32 %v224, %v232
        %v241 = vmax.f32 %v225, %v233
        %v242 = vmax.f32 %v226, %v234
        %v243 = vmax.f32 %v227, %v235
        %244 = vst [vmem:[#allocation2] sm:$0xff] %v236
        %245 = vst [vmem:[#allocation2 + $0x8] sm:$0xff] %v237
        %246 = vst [vmem:[#allocation2 + $0x10] sm:$0xff] %v238
        %247 = vst [vmem:[#allocation2 + $0x18] sm:$0xff] %v239
        %248 = vst [vmem:[#allocation2 + $0x20] sm:$0xff] %v240
        %249 = vst [vmem:[#allocation2 + $0x28] sm:$0xff] %v241
        %250 = vst [vmem:[#allocation2 + $0x30] sm:$0xff] %v242
        %251 = vst [vmem:[#allocation2 + $0x38] sm:$0xff] %v243
        // Predicated region
        $region41: #{tpu_custom_call.1} parent=31 // pred_check
          %p252 = pneg %p208
        $region42: #{tpu_custom_call.1} parent=31 // pred_check_branch
          %254 = sbr.rel (%p252) target = $region44
        $region43: #{tpu_custom_call.1} parent=31 // pred_region
          %v255 = vld [vmem:[#allocation2] sm:$0xff]
          %v256 = vld [vmem:[#allocation2 + $0x8] sm:$0xff]
          %v257 = vld [vmem:[#allocation2 + $0x10] sm:$0xff]
          %v258 = vld [vmem:[#allocation2 + $0x18] sm:$0xff]
          %v259 = vld [vmem:[#allocation2 + $0x20] sm:$0xff]
          %v260 = vld [vmem:[#allocation2 + $0x28] sm:$0xff]
          %v261 = vld [vmem:[#allocation2 + $0x30] sm:$0xff]
          %v262 = vld [vmem:[#allocation2 + $0x38] sm:$0xff]
          %v263 = vmax.f32 %v255, %v256
          %264 = vmax.xlane.f32.xlu0 %v263
          %v265 = vpop.xlane.xlu0 %264
          %v266 = vmax.f32 %v257, %v258
          %267 = vmax.xlane.f32.xlu0 %v266
          %v268 = vpop.xlane.xlu0 %267
          %v269 = vmax.f32 %v259, %v260
          %270 = vmax.xlane.f32.xlu0 %v269
          %v271 = vpop.xlane.xlu0 %270
          %v272 = vmax.f32 %v261, %v262
          %273 = vmax.xlane.f32.xlu0 %v272
          %v274 = vpop.xlane.xlu0 %273
          %v275 = vld [vmem:[%s1] sm:$0xff]
          %v276 = vld [vmem:[%s1 + $0x8] sm:$0xff]
          %v277 = vld [vmem:[%s1 + $0x10] sm:$0xff]
          %v278 = vld [vmem:[%s1 + $0x18] sm:$0xff]
          %v279 = vmul.f32 %v275, %v265
          %v280 = vmul.f32 %v276, %v268
          %v281 = vmul.f32 %v277, %v271
          %v282 = vmul.f32 %v278, %v274
          %vm283 = vcmask 15360
          %v284 = vsel %vm283, %v279, 0.0
          %v285 = vsel %vm283, %v280, 0.0
          %v286 = vadd.f32 %v284, %v285
          %v287 = vsel %vm283, %v281, 0.0
          %v288 = vadd.f32 %v286, %v287
          %v289 = vsel %vm283, %v282, 0.0
          %v290 = vadd.f32 %v288, %v289
          %v291 = vrot.slane %v290, 4
          %v292 = vadd.f32 %v290, %v291
          %v293 = vrot.slane %v292, 2
          %v294 = vadd.f32 %v292, %v293
          %v295 = vrot.slane %v294, 1
          %v296 = vadd.f32 %v294, %v295
          %v297 = vmax.f32 %v296, 0.0
          %v298 = vld [vmem:[%s2] sm:$0xff]
          %v299 = vld [vmem:[%s2 + $0x8] sm:$0xff]
          %v300 = vld [vmem:[%s2 + $0x10] sm:$0xff]
          %v301 = vld [vmem:[%s2 + $0x18] sm:$0xff]
          %v302 = vmul.f32 %v298, %v297
          %v303 = vmul.f32 %v299, %v297
          %v304 = vmul.f32 %v300, %v297
          %v305 = vmul.f32 %v301, %v297
          %v306 = vsel %vm283, %v302, 0.0
          %307 = vadd.xlane.f32.xlu0 %v306
          %v308 = vpop.xlane.xlu0 %307
          %v309 = vsel %vm283, %v303, 0.0
          %310 = vadd.xlane.f32.xlu0 %v309
          %v311 = vpop.xlane.xlu0 %310
          %v312 = vsel %vm283, %v304, 0.0
          %313 = vadd.xlane.f32.xlu0 %v312
          %v314 = vpop.xlane.xlu0 %313
          %v315 = vsel %vm283, %v305, 0.0
          %316 = vadd.xlane.f32.xlu0 %v315
          %v317 = vpop.xlane.xlu0 %316
          %v318 = vxor.u32 %v308, 2147483648
          %v319 = vxor.u32 %v311, 2147483648
          %v320 = vxor.u32 %v314, 2147483648
          %v321 = vxor.u32 %v317, 2147483648
          %v322 = vmul.f32 %v318, 1.442695
          %v323 = vpow.pop %v322
          %v324 = vmul.f32 %v319, 1.442695
          %v325 = vpow.pop %v324
          %v326 = vmul.f32 %v320, 1.442695
          %v327 = vpow.pop %v326
          %v328 = vmul.f32 %v321, 1.442695
          %v329 = vpow.pop %v328
          %v330 = vadd.f32 %v323, 1.0
          %v331 = vadd.f32 %v325, 1.0
          %v332 = vadd.f32 %v327, 1.0
          %v333 = vadd.f32 %v329, 1.0
          %v334 = vrcp.pop %v330
          %v335 = vmul.f32 1.0, %v334
          %v336 = vrcp.pop %v331
          %v337 = vmul.f32 1.0, %v336
          %v338 = vrcp.pop %v332
          %v339 = vmul.f32 1.0, %v338
          %v340 = vrcp.pop %v333
          %v341 = vmul.f32 1.0, %v340
          %vm342 = vcmask 7168
          %343 = vst.msk [vmem:[%s207] sm:$0xff] %vm342, %v335
          %344 = vst.msk [vmem:[%s207 + $0x8] sm:$0xff] %vm342, %v337
          %345 = vst.msk [vmem:[%s207 + $0x10] sm:$0xff] %vm342, %v339
          %346 = vst.msk [vmem:[%s207 + $0x18] sm:$0xff] %vm342, %v341
        $region44: #{tpu_custom_call.1} parent=31 // pred_fallthru
          _
        %p347 = scmp.lt.s32.totalorder %s21, 1
        %s348 = scalar_select %p347, %s21, 1
        %s349 = smul.addr %s348, 4
        %s350 = smul.addr %s349, 8
        %s351 = scalar_lea.vmem %s3, %s350
        // Predicated region
        $region45: #{tpu_custom_call.1} parent=31 // pred_check
          %p352 = pneg %p117
        $region46: #{tpu_custom_call.1} parent=31 // pred_check_branch
          %354 = sbr.rel (%p352) target = $region48
        $region47: #{tpu_custom_call.1} parent=31 // pred_region
          _
        $region48: #{tpu_custom_call.1} parent=31 // pred_fallthru
          _
      $region32: #{tpu_custom_call.1} parent=5 // pred_fallthru
        _
      %p355 = scmp.le.s32.totalorder 2, %s12
      // Predicated region
      $region49: #{tpu_custom_call.1} parent=5 // pred_check
        %p356 = pneg %p355
      $region50: #{tpu_custom_call.1} parent=5 // pred_check_branch
        %358 = sbr.rel (%p356) target = $region52
      $region51: #{tpu_custom_call.1} parent=5 // pred_region
        %s359 = ssub.s32 %s12, 2
        // Predicated region
        $region53: #{tpu_custom_call.1} parent=51 // pred_check
          %p360 = pneg %p123
        $region54: #{tpu_custom_call.1} parent=51 // pred_check_branch
          %362 = sbr.rel (%p360) target = $region56
        $region55: #{tpu_custom_call.1} parent=51 // pred_region
          %p363 = scmp.lt.s32.totalorder %s23, 1
          %s364 = scalar_select %p363, %s23, 1
          %s365 = smul.addr %s364, 4
          %s366 = smul.addr %s365, 8
          %s367 = scalar_lea.vmem %s3, %s366
        $region56: #{tpu_custom_call.1} parent=51 // pred_fallthru
          _
      $region52: #{tpu_custom_call.1} parent=5 // pred_fallthru
        _
    $region6: #{tpu_custom_call.1} parent=1 // loop_footer
      %s16 = sadd.s32 1, %s12
    $region7: #{tpu_custom_call.1} parent=1 // loop_footer_branch
      %11 = sbr.rel target = $region3
    $region8: #{tpu_custom_call.1} parent=1 // loop_exit
      _
    %368 = vsyncpa [#allocation4], 1
    %s369 = scalar_lea.sflag [#allocation4], 1
    %370 = vsyncpa %s369, 1

</llo_original>
